<compile_context>
chip_gen: v7x
topology: tpu7x:2x2x1
jax: 0.10.0
libtpu: 0.0.40
codegen_flags: <defaults>
</compile_context>

<pallas_src>
import functools

import jax
import jax.numpy as jnp
from jax import lax
from jax.experimental import pallas as pl
from jax.experimental.pallas import tpu as pltpu


def _cross_attn_kernel(qp_ref, kv_ref, wqt_ref, wk_ref, wv_ref, wp_ref, bp_ref,
                       sel_ref, selt_ref, o_ref, *, scale):
    # qp_ref : (1, 1, C) f32   pooled query (row form)
    # kv_ref : (1, C, Nkv) bf16 (channel-first, NCW kept)
    # wqt_ref: (C, C) f32  (in, out)  -- row-form q projection
    # wk_ref : (C, C) f32  (out, in)  -- folded into the query side
    # wv_ref : (C, C) f32  (out, in)  -- folded out of the big contraction
    # wp_ref : (C, C) f32 (out, in);  bp_ref: (C, 1) f32
    # sel_ref: (C, H) f32; selt_ref: (H, C) f32  (head selector constants)
    # o_ref  : (1, C, 1) f32
    qp = qp_ref[0]                                   # (1, C) f32
    kvb = kv_ref[0]                                  # (C, Nkv) bf16

    # ---- q path (tiny, f32): q_row = pooled_q @ wq^T
    q_row = jnp.dot(qp, wqt_ref[...],
                    preferred_element_type=jnp.float32)               # (1, C)

    # ---- k projection folded into the query side (H << C):
    #      scores = ((selt * q_row * scale) @ wk) @ kv
    m_hd = selt_ref[...] * (q_row * scale)                            # (H, C)
    qk = jnp.dot(m_hd, wk_ref[...],
                 preferred_element_type=jnp.float32)                  # (H, C)
    scores = jnp.dot(qk.astype(jnp.bfloat16), kvb,
                     preferred_element_type=jnp.float32)              # (H, Nkv)

    # ---- softmax over the kv axis (lane axis)
    smax = jnp.max(scores, axis=1, keepdims=True)
    e = jnp.exp(scores - smax)
    p = e * pl.reciprocal(jnp.sum(e, axis=1, keepdims=True), approx=True)  # (H, Nkv)

    # ---- v projection folded out of the big contraction:
    #      U[c_in, h] = sum_n kv[c_in, n] * p[h, n]   (MXU NT contraction)
    #      ctx[c]     = (wv @ U)[c, head(c)]
    u = lax.dot_general(kvb, p.astype(jnp.bfloat16),
                        (((1,), (1,)), ((), ())),
                        preferred_element_type=jnp.float32)           # (C, H)
    w = jnp.dot(wv_ref[...], u, preferred_element_type=jnp.float32)   # (C, H)
    ctx = jnp.sum(w * sel_ref[...], axis=1, keepdims=True)            # (C, 1)

    # ---- output projection (with bias) -> single column per batch element
    out_col = jnp.dot(wp_ref[...], ctx,
                      preferred_element_type=jnp.float32) + bp_ref[...]    # (C, 1)
    o_ref[0] = out_col.astype(o_ref.dtype)


def cross_attention_csvit(query, kv, params, *, num_heads=8, qk_scale=None):
    """query: (B, C, N_query), kv: (B, C, N_kv) -> (B, C, N_query)."""
    B, C, Nq = query.shape
    _, _, Nkv = kv.shape
    H = num_heads
    dh = C // H
    scale = qk_scale if qk_scale is not None else dh ** (-0.5)

    # adaptive_max_pool1d(query, 1): fused XLA reduce in the wrapper so the
    # kernel never stages the (C, Nq) query slab -- it only sees (1, C).
    qp = jnp.max(query, axis=2)[:, None, :].astype(jnp.float32)      # (B, 1, C)

    # kv stays in NCW form; bf16 stream for the two MXU contractions.
    kv_b = kv.astype(jnp.bfloat16)                                   # (B, C, Nkv)

    # weight glue (tiny (C,C) tensors, done once)
    wq_t = params["wq"].T.astype(jnp.float32)        # (in, out) for row-form q
    wk = params["wk"].astype(jnp.float32)            # (out, in), query-side fold
    wv = params["wv"].astype(jnp.float32)            # (out, in), ctx-side fold
    wp = params["proj_w"].astype(jnp.float32)        # (out, in)
    bp = params["proj_b"].reshape(C, 1).astype(jnp.float32)

    # head-selector constants, resident across the whole grid
    head_of_c = jnp.arange(C, dtype=jnp.int32) // dh
    sel = (head_of_c[:, None] == jnp.arange(H, dtype=jnp.int32)[None, :]
           ).astype(jnp.float32)                                     # (C, H)
    sel_t = jnp.transpose(sel)                                       # (H, C)

    kernel = functools.partial(_cross_attn_kernel, scale=scale)
    const = lambda b: (0, 0)

    out = pl.pallas_call(
        kernel,
        out_shape=jax.ShapeDtypeStruct((B, C, 1), jnp.float32),
        grid_spec=pltpu.PrefetchScalarGridSpec(
            num_scalar_prefetch=0,
            grid=(B,),
            in_specs=[
                pl.BlockSpec((1, 1, C), lambda b: (b, 0, 0)),     # pooled query
                pl.BlockSpec((1, C, Nkv), lambda b: (b, 0, 0)),   # kv (NCW)
                pl.BlockSpec((C, C), const),                      # wq^T
                pl.BlockSpec((C, C), const),                      # wk
                pl.BlockSpec((C, C), const),                      # wv
                pl.BlockSpec((C, C), const),                      # proj w
                pl.BlockSpec((C, 1), const),                      # proj b
                pl.BlockSpec((C, H), const),                      # sel
                pl.BlockSpec((H, C), const),                      # sel^T
            ],
            out_specs=pl.BlockSpec((1, C, 1), lambda b: (b, 0, 0)),
        ),
        compiler_params=pltpu.CompilerParams(dimension_semantics=("parallel",)),
    )(qp, kv_b, wq_t, wk, wv, wp, bp, sel, sel_t)

    # repeat(1, N_query, 1).permute back == broadcast the single column over Nq
    return jnp.broadcast_to(out, (B, C, Nq))


def cross_attention_reference(query, kv, params, *, num_heads=8, qk_scale=None):
    """Pure-JAX f32 reference mirroring the PyTorch forward."""
    B, C, Nq = query.shape
    _, _, Nkv = kv.shape
    H = num_heads
    Dh = C // H
    scale = qk_scale if qk_scale is not None else Dh ** (-0.5)

    qmax = jnp.max(query, axis=2)[:, None, :]                 # (B, 1, C)
    kv_t = jnp.transpose(kv, (0, 2, 1))                       # (B, N, C)
    q = qmax @ params["wq"].T                                 # (B, 1, C)
    k = kv_t @ params["wk"].T                                 # (B, N, C)
    v = kv_t @ params["wv"].T                                 # (B, N, C)
    qh = q.reshape(B, 1, H, Dh).transpose(0, 2, 1, 3)         # (B, H, 1, Dh)
    kh = k.reshape(B, Nkv, H, Dh).transpose(0, 2, 1, 3)       # (B, H, N, Dh)
    vh = v.reshape(B, Nkv, H, Dh).transpose(0, 2, 1, 3)
    attn = jnp.einsum("bhqd,bhkd->bhqk", qh, kh) * scale
    attn = jax.nn.softmax(attn, axis=-1)
    x = jnp.einsum("bhqk,bhkd->bhqd", attn, vh)               # (B, H, 1, Dh)
    x = x.transpose(0, 2, 1, 3).reshape(B, 1, C)
    x = x @ params["proj_w"].T + params["proj_b"]             # (B, 1, C)
    x = jnp.broadcast_to(x, (B, Nq, C))                       # repeat(1, Nq, 1)
    return jnp.transpose(x, (0, 2, 1))                        # (B, C, Nq)


if __name__ == "__main__":
    B, C, Nq, Nkv = 2, 32, 16, 8
    NUM_HEADS = 8

    key = jax.random.PRNGKey(0)
    kq, kkv, k1, k2, k3, k4, k5 = jax.random.split(key, 7)

    query = jax.random.normal(kq, (B, C, Nq), dtype=jnp.float32)
    kv = jax.random.normal(kkv, (B, C, Nkv), dtype=jnp.float32)

    # deterministic synthetic parameters (nn.Linear(dim, dim); wq/wk/wv bias=False)
    params = {
        "wq": 0.1 * jax.random.normal(k1, (C, C), dtype=jnp.float32),
        "wk": 0.1 * jax.random.normal(k2, (C, C), dtype=jnp.float32),
        "wv": 0.1 * jax.random.normal(k3, (C, C), dtype=jnp.float32),
        "proj_w": 0.1 * jax.random.normal(k4, (C, C), dtype=jnp.float32),
        "proj_b": 0.1 * jax.random.normal(k5, (C,), dtype=jnp.float32),
    }

    out = cross_attention_csvit(query, kv, params, num_heads=NUM_HEADS)
    out = jax.block_until_ready(out)

    ref = cross_attention_reference(query, kv, params, num_heads=NUM_HEADS)
    assert out.shape == (B, C, Nq), out.shape
    # bf16 MXU operands + approx softmax reciprocal vs f32 reference -> loose tol
    max_err = float(jnp.max(jnp.abs(out - ref)))
    assert jnp.allclose(out, ref, rtol=5e-2, atol=5e-2), max_err

    print("KERNEL_OK")
</pallas_src>

<mosaic_0001>
module attributes {stable_mosaic.version = 11 : i64} {
  func.func @_cross_attn_kernel(%arg0: i32, %arg1: memref<1x1x32xf32, #tpu.memory_space<vmem>>, %arg2: memref<1x32x8xbf16, #tpu.memory_space<vmem>>, %arg3: memref<32x32xf32, #tpu.memory_space<vmem>>, %arg4: memref<32x32xf32, #tpu.memory_space<vmem>>, %arg5: memref<32x32xf32, #tpu.memory_space<vmem>>, %arg6: memref<32x32xf32, #tpu.memory_space<vmem>>, %arg7: memref<32x1xf32, #tpu.memory_space<vmem>>, %arg8: memref<32x8xf32, #tpu.memory_space<vmem>>, %arg9: memref<8x32xf32, #tpu.memory_space<vmem>>, %arg10: memref<1x32x1xf32, #tpu.memory_space<vmem>>) attributes {dimension_semantics = [#tpu.dimension_semantics<parallel>], iteration_bounds = array<i64: 2>, scalar_prefetch = 0 : i64, scratch_operands = 0 : i64, tpu.core_type = #tpu.core_type<tc>, window_params = [{transform_indices = @transform_0, window_bounds = array<i64: 1, 1, 32>}, {transform_indices = @transform_1, window_bounds = array<i64: 1, 32, 8>}, {pipeline_mode = #tpu.pipeline_mode<synchronous>, transform_indices = @transform_2, window_bounds = array<i64: 32, 32>}, {pipeline_mode = #tpu.pipeline_mode<synchronous>, transform_indices = @transform_3, window_bounds = array<i64: 32, 32>}, {pipeline_mode = #tpu.pipeline_mode<synchronous>, transform_indices = @transform_4, window_bounds = array<i64: 32, 32>}, {pipeline_mode = #tpu.pipeline_mode<synchronous>, transform_indices = @transform_5, window_bounds = array<i64: 32, 32>}, {pipeline_mode = #tpu.pipeline_mode<synchronous>, transform_indices = @transform_6, window_bounds = array<i64: 32, 1>}, {pipeline_mode = #tpu.pipeline_mode<synchronous>, transform_indices = @transform_7, window_bounds = array<i64: 32, 8>}, {pipeline_mode = #tpu.pipeline_mode<synchronous>, transform_indices = @transform_8, window_bounds = array<i64: 8, 32>}, {transform_indices = @transform_9, window_bounds = array<i64: 1, 32, 1>}]} {
    %c0 = arith.constant 0 : index
    %c0_0 = arith.constant 0 : index
    %c0_1 = arith.constant 0 : index
    %0 = vector.load %arg1[%c0, %c0_0, %c0_1] : memref<1x1x32xf32, #tpu.memory_space<vmem>>, vector<1x1x32xf32>
    %1 = vector.shape_cast %0 : vector<1x1x32xf32> to vector<1x32xf32>
    %c0_2 = arith.constant 0 : index
    %c0_3 = arith.constant 0 : index
    %c0_4 = arith.constant 0 : index
    %2 = vector.load %arg2[%c0_2, %c0_3, %c0_4] : memref<1x32x8xbf16, #tpu.memory_space<vmem>>, vector<1x32x8xbf16>
    %3 = vector.shape_cast %2 : vector<1x32x8xbf16> to vector<32x8xbf16>
    %c0_5 = arith.constant 0 : index
    %c0_6 = arith.constant 0 : index
    %4 = vector.load %arg3[%c0_5, %c0_6] : memref<32x32xf32, #tpu.memory_space<vmem>>, vector<32x32xf32>
    %cst = arith.constant dense<0.000000e+00> : vector<1x32xf32>
    %5 = tpu.matmul %1, %4, %cst {dimension_numbers = #tpu.dot_dimension_numbers<[1], [0], [0], [1], [0, 0, 1, 1], [], []>} : vector<1x32xf32>, vector<32x32xf32>, vector<1x32xf32> -> vector<1x32xf32>
    %c0_7 = arith.constant 0 : index
    %c0_8 = arith.constant 0 : index
    %6 = vector.load %arg9[%c0_7, %c0_8] : memref<8x32xf32, #tpu.memory_space<vmem>>, vector<8x32xf32>
    %cst_9 = arith.constant 5.000000e-01 : f32
    %7 = vector.broadcast %cst_9 : f32 to vector<1x32xf32>
    %8 = arith.mulf %5, %7 : vector<1x32xf32>
    %9 = vector.broadcast %8 : vector<1x32xf32> to vector<8x32xf32>
    %10 = arith.mulf %6, %9 : vector<8x32xf32>
    %c0_10 = arith.constant 0 : index
    %c0_11 = arith.constant 0 : index
    %11 = vector.load %arg4[%c0_10, %c0_11] : memref<32x32xf32, #tpu.memory_space<vmem>>, vector<32x32xf32>
    %cst_12 = arith.constant dense<0.000000e+00> : vector<8x32xf32>
    %12 = tpu.matmul %10, %11, %cst_12 {dimension_numbers = #tpu.dot_dimension_numbers<[1], [0], [0], [1], [0, 0, 1, 1], [], []>} : vector<8x32xf32>, vector<32x32xf32>, vector<8x32xf32> -> vector<8x32xf32>
    %13 = arith.truncf %12 : vector<8x32xf32> to vector<8x32xbf16>
    %cst_13 = arith.constant dense<0.000000e+00> : vector<8x8xf32>
    %14 = tpu.matmul %13, %3, %cst_13 {dimension_numbers = #tpu.dot_dimension_numbers<[1], [0], [0], [1], [0, 0, 1, 1], [], []>} : vector<8x32xbf16>, vector<32x8xbf16>, vector<8x8xf32> -> vector<8x8xf32>
    %cst_14 = arith.constant dense<0xFF800000> : vector<8xf32>
    %15 = vector.multi_reduction <maximumf>, %14, %cst_14 [1] : vector<8x8xf32> to vector<8xf32>
    %16 = vector.shape_cast %15 : vector<8xf32> to vector<8x1xf32>
    %17 = vector.broadcast %16 : vector<8x1xf32> to vector<8x8xf32>
    %18 = arith.subf %14, %17 : vector<8x8xf32>
    %19 = math.exp %18 : vector<8x8xf32>
    %cst_15 = arith.constant dense<0.000000e+00> : vector<8xf32>
    %20 = vector.multi_reduction <add>, %19, %cst_15 [1] : vector<8x8xf32> to vector<8xf32>
    %21 = vector.shape_cast %20 : vector<8xf32> to vector<8x1xf32>
    %22 = tpu.reciprocal %21 {approx = true} : vector<8x1xf32> -> vector<8x1xf32>
    %23 = vector.broadcast %22 : vector<8x1xf32> to vector<8x8xf32>
    %24 = arith.mulf %19, %23 : vector<8x8xf32>
    %25 = arith.truncf %24 : vector<8x8xf32> to vector<8x8xbf16>
    %cst_16 = arith.constant dense<0.000000e+00> : vector<32x8xf32>
    %26 = tpu.matmul %3, %25, %cst_16 {dimension_numbers = #tpu.dot_dimension_numbers<[1], [1], [0], [0], [0, 0, 1, 0], [], []>} : vector<32x8xbf16>, vector<8x8xbf16>, vector<32x8xf32> -> vector<32x8xf32>
    %c0_17 = arith.constant 0 : index
    %c0_18 = arith.constant 0 : index
    %27 = vector.load %arg5[%c0_17, %c0_18] : memref<32x32xf32, #tpu.memory_space<vmem>>, vector<32x32xf32>
    %cst_19 = arith.constant dense<0.000000e+00> : vector<32x8xf32>
    %28 = tpu.matmul %27, %26, %cst_19 {dimension_numbers = #tpu.dot_dimension_numbers<[1], [0], [0], [1], [0, 0, 1, 1], [], []>} : vector<32x32xf32>, vector<32x8xf32>, vector<32x8xf32> -> vector<32x8xf32>
    %c0_20 = arith.constant 0 : index
    %c0_21 = arith.constant 0 : index
    %29 = vector.load %arg8[%c0_20, %c0_21] : memref<32x8xf32, #tpu.memory_space<vmem>>, vector<32x8xf32>
    %30 = arith.mulf %28, %29 : vector<32x8xf32>
    %cst_22 = arith.constant dense<0.000000e+00> : vector<32xf32>
    %31 = vector.multi_reduction <add>, %30, %cst_22 [1] : vector<32x8xf32> to vector<32xf32>
    %32 = vector.shape_cast %31 : vector<32xf32> to vector<32x1xf32>
    %c0_23 = arith.constant 0 : index
    %c0_24 = arith.constant 0 : index
    %33 = vector.load %arg6[%c0_23, %c0_24] : memref<32x32xf32, #tpu.memory_space<vmem>>, vector<32x32xf32>
    %cst_25 = arith.constant dense<0.000000e+00> : vector<32x1xf32>
    %34 = tpu.matmul %33, %32, %cst_25 {dimension_numbers = #tpu.dot_dimension_numbers<[1], [0], [0], [1], [0, 0, 1, 1], [], []>} : vector<32x32xf32>, vector<32x1xf32>, vector<32x1xf32> -> vector<32x1xf32>
    %c0_26 = arith.constant 0 : index
    %c0_27 = arith.constant 0 : index
    %35 = vector.load %arg7[%c0_26, %c0_27] : memref<32x1xf32, #tpu.memory_space<vmem>>, vector<32x1xf32>
    %36 = arith.addf %34, %35 : vector<32x1xf32>
    %c0_28 = arith.constant 0 : index
    %c0_29 = arith.constant 0 : index
    %c0_30 = arith.constant 0 : index
    %37 = vector.load %arg10[%c0_28, %c0_29, %c0_30] : memref<1x32x1xf32, #tpu.memory_space<vmem>>, vector<1x32x1xf32>
    %38 = vector.shape_cast %37 : vector<1x32x1xf32> to vector<32x1xf32>
    %39 = vector.shape_cast %36 : vector<32x1xf32> to vector<1x32x1xf32>
    tpu.vector_store %arg10[%c0_28, %c0_29, %c0_30], %39 {strides = array<i32>} : memref<1x32x1xf32, #tpu.memory_space<vmem>>, vector<1x32x1xf32>,
    return
  }
  func.func @transform_0(%arg0: i32) -> (i32, i32, i32) {
    %c0_i32 = arith.constant 0 : i32
    %c0_i32_0 = arith.constant 0 : i32
    %c0_i32_1 = arith.constant 0 : i32
    return %arg0, %c0_i32, %c0_i32_0 : i32, i32, i32
  }
  func.func @transform_1(%arg0: i32) -> (i32, i32, i32) {
    %c0_i32 = arith.constant 0 : i32
    %c0_i32_0 = arith.constant 0 : i32
    %c0_i32_1 = arith.constant 0 : i32
    return %arg0, %c0_i32, %c0_i32_0 : i32, i32, i32
  }
  func.func @transform_2(%arg0: i32) -> (i32, i32) {
    %c0_i32 = arith.constant 0 : i32
    %c0_i32_0 = arith.constant 0 : i32
    %c0_i32_1 = arith.constant 0 : i32
    return %c0_i32, %c0_i32_0 : i32, i32
  }
  func.func @transform_3(%arg0: i32) -> (i32, i32) {
    %c0_i32 = arith.constant 0 : i32
    %c0_i32_0 = arith.constant 0 : i32
    %c0_i32_1 = arith.constant 0 : i32
    return %c0_i32, %c0_i32_0 : i32, i32
  }
  func.func @transform_4(%arg0: i32) -> (i32, i32) {
    %c0_i32 = arith.constant 0 : i32
    %c0_i32_0 = arith.constant 0 : i32
    %c0_i32_1 = arith.constant 0 : i32
    return %c0_i32, %c0_i32_0 : i32, i32
  }
  func.func @transform_5(%arg0: i32) -> (i32, i32) {
    %c0_i32 = arith.constant 0 : i32
    %c0_i32_0 = arith.constant 0 : i32
    %c0_i32_1 = arith.constant 0 : i32
    return %c0_i32, %c0_i32_0 : i32, i32
  }
  func.func @transform_6(%arg0: i32) -> (i32, i32) {
    %c0_i32 = arith.constant 0 : i32
    %c0_i32_0 = arith.constant 0 : i32
    %c0_i32_1 = arith.constant 0 : i32
    return %c0_i32, %c0_i32_0 : i32, i32
  }
  func.func @transform_7(%arg0: i32) -> (i32, i32) {
    %c0_i32 = arith.constant 0 : i32
    %c0_i32_0 = arith.constant 0 : i32
    %c0_i32_1 = arith.constant 0 : i32
    return %c0_i32, %c0_i32_0 : i32, i32
  }
  func.func @transform_8(%arg0: i32) -> (i32, i32) {
    %c0_i32 = arith.constant 0 : i32
    %c0_i32_0 = arith.constant 0 : i32
    %c0_i32_1 = arith.constant 0 : i32
    return %c0_i32, %c0_i32_0 : i32, i32
  }
  func.func @transform_9(%arg0: i32) -> (i32, i32, i32) {
    %c0_i32 = arith.constant 0 : i32
    %c0_i32_0 = arith.constant 0 : i32
    %c0_i32_1 = arith.constant 0 : i32
    return %arg0, %c0_i32, %c0_i32_0 : i32, i32, i32
  }
}

</mosaic_0001>

<llo_original>
// kernel: tpu_custom_call.1
$region0: #{tpu_custom_call.1}
  #allocation0 [shape = 'u32[]', space=smem, size = 0x4, offset = 0x4, fixed_abs, tag = 'smem constant byte address 0x4 - core index']
  #allocation1 [shape = 'u32[144,128]{1,0:T(1,128)}', space=vmem, size = 0x12000, scoped, tag = 'internal scratch']
  %s0 = inlined_call_operand.hbm [shape: f32[2,1,32], index: 0, kind: input, shape index: {}]
  %s1 = inlined_call_operand.vmem [shape: bf16[2,32,8], index: 1, kind: input, shape index: {}]
  %s2 = inlined_call_operand.vmem [shape: f32[32,32], index: 2, kind: input, shape index: {}]
  %s3 = inlined_call_operand.vmem [shape: f32[32,32], index: 3, kind: input, shape index: {}]
  %s4 = inlined_call_operand.vmem [shape: f32[32,32], index: 4, kind: input, shape index: {}]
  %s5 = inlined_call_operand.vmem [shape: f32[32,32], index: 5, kind: input, shape index: {}]
  %s6 = inlined_call_operand.vmem [shape: f32[32,1], index: 6, kind: input, shape index: {}]
  %s7 = inlined_call_operand.vmem [shape: f32[32,8], index: 7, kind: input, shape index: {}]
  %s8 = inlined_call_operand.hbm [shape: f32[8,32], index: 8, kind: input, shape index: {}]
  %s9 = inlined_call_operand.vmem [shape: f32[2,32,1], index: 9, kind: output, shape index: {}]
  %s10 = sld [smem:[#allocation0]]
  $region77: #{tpu_custom_call.1} parent=0
    _
  %s12 = ssub.s32 1, %s10
  %s13 = scalar_select 0, %s12, %s10
  $region1: #{tpu_custom_call.1} parent=0
    #allocation2 [shape = 'u8[1024]{0}', space=vmem, size = 0x400, scoped, tag = 'input window, operand 0']
    #allocation3 [shape = 's32[2]{0}', space=sflag, size = 0x8, scoped, tag = 'scoped memory for tpu_custom_call.1']
    #allocation4 [shape = 'u8[4096]{0}', space=vmem, size = 0x1000, scoped, tag = 'input window, operand 8, single buffered']
    #allocation5 [shape = 's32[1]{0}', space=sflag, size = 0x4, scoped, tag = 'scoped memory for tpu_custom_call.1']
    %14 = vsyncpa [#allocation3], 0
    %s15 = scalar_lea.sflag [#allocation3], 1
    %16 = vsyncpa %s15, 0
    %17 = vsyncpa [#allocation5], 0
    loop: start=0, step=1, limit=4
    $region2: #{tpu_custom_call.1} parent=1 // loop_pre_header
      _
    $region3: #{tpu_custom_call.1} parent=1 // loop_header
      %s19 = sphi 0, %s23
      %p20 = scmp.ge.s32.totalorder %s19, 4
      %s29 = sphi 0, %s31
      %s32 = sphi 0, %s29
      %s33 = sphi 0, %s32
      %s49 = sphi 0, %s33
      %s55 = sphi 0, %s57
      %s58 = sphi 0, %s55
      %s59 = sphi 0, %s58
      %s75 = sphi 0, %s59
      %s79 = sphi 0, %s79
      %s81 = sphi 0, %s79
      %s82 = sphi 0, %s81
      %s96 = sphi 0, %s82
      %s100 = sphi 0, %s100
      %s102 = sphi 0, %s100
      %s103 = sphi 0, %s102
      %s117 = sphi 0, %s103
      %s121 = sphi 0, %s121
      %s123 = sphi 0, %s121
      %s124 = sphi 0, %s123
      %s138 = sphi 0, %s124
      %s142 = sphi 0, %s142
      %s144 = sphi 0, %s142
      %s145 = sphi 0, %s144
      %s159 = sphi 0, %s145
      %s163 = sphi 0, %s163
      %s165 = sphi 0, %s163
      %s166 = sphi 0, %s165
      %s180 = sphi 0, %s166
      %s184 = sphi 0, %s184
      %s186 = sphi 0, %s184
      %s187 = sphi 0, %s186
      %s201 = sphi 0, %s187
      %s205 = sphi 0, %s205
      %s207 = sphi 0, %s205
      %s208 = sphi 0, %s207
      %s222 = sphi 0, %s208
      %s228 = sphi 0, %s230
      %s231 = sphi 0, %s228
      %s232 = sphi 0, %s231
      %s248 = sphi 0, %s232
    $region4: #{tpu_custom_call.1} parent=1 // loop_header_branch
      %22 = sbr.rel (%p20) target = $region8
    $region5: #{tpu_custom_call.1} parent=1 // loop_body
      %s24 = ssub.s32 %s19, 1
      %s25 = ssub.s32 %s19, 2
      %s26 = sadd.s32 %s19, 1
      %s27 = ssub.s32 %s19, %s26
      %p28 = scmp.eq.s32.totalorder %s27, 0
      %s30 = sadd.s32 %s29, 1
      %s31 = scalar_select %p28, %s29, %s30
      %p34 = pneg %p28
      %p35 = scmp.eq.s32.totalorder %s19, 1
      %p36 = por %p34, %p35
      %p37 = scmp.ne.s32.totalorder %s29, %s32
      %p38 = scmp.eq.s32.totalorder %s19, 0
      %p39 = por %p37, %p38
      %p40 = scmp.ne.s32.totalorder %s29, %s32
      %p41 = scmp.eq.s32.totalorder %s24, 1
      %p42 = por %p40, %p41
      %p43 = scmp.ne.s32.totalorder %s32, %s33
      %p44 = scmp.eq.s32.totalorder %s24, 0
      %p45 = por %p43, %p44
      %p46 = scmp.ne.s32.totalorder %s32, %s33
      %p47 = scmp.eq.s32.totalorder %s25, 1
      %p48 = por %p46, %p47
      %p50 = scmp.ne.s32.totalorder %s33, %s49
      %p51 = scmp.eq.s32.totalorder %s25, 0
      %p52 = por %p50, %p51
      %s53 = ssub.s32 %s19, %s26
      %p54 = scmp.eq.s32.totalorder %s53, 0
      %s56 = sadd.s32 %s55, 1
      %s57 = scalar_select %p54, %s55, %s56
      %p60 = pneg %p54
      %p61 = scmp.eq.s32.totalorder %s19, 1
      %p62 = por %p60, %p61
      %p63 = scmp.ne.s32.totalorder %s55, %s58
      %p64 = scmp.eq.s32.totalorder %s19, 0
      %p65 = por %p63, %p64
      %p66 = scmp.ne.s32.totalorder %s55, %s58
      %p67 = scmp.eq.s32.totalorder %s24, 1
      %p68 = por %p66, %p67
      %p69 = scmp.ne.s32.totalorder %s58, %s59
      %p70 = scmp.eq.s32.totalorder %s24, 0
      %p71 = por %p69, %p70
      %p72 = scmp.ne.s32.totalorder %s58, %s59
      %p73 = scmp.eq.s32.totalorder %s25, 1
      %p74 = por %p72, %p73
      %p76 = scmp.ne.s32.totalorder %s59, %s75
      %p77 = scmp.eq.s32.totalorder %s25, 0
      %p78 = por %p76, %p77
      %s80 = sadd.s32 %s79, 1
      %p83 = scmp.eq.s32.totalorder %s19, 1
      %p84 = scmp.ne.s32.totalorder %s79, %s81
      %p85 = scmp.eq.s32.totalorder %s19, 0
      %p86 = por %p84, %p85
      %p87 = scmp.ne.s32.totalorder %s79, %s81
      %p88 = scmp.eq.s32.totalorder %s24, 1
      %p89 = por %p87, %p88
      %p90 = scmp.ne.s32.totalorder %s81, %s82
      %p91 = scmp.eq.s32.totalorder %s24, 0
      %p92 = por %p90, %p91
      %p93 = scmp.ne.s32.totalorder %s81, %s82
      %p94 = scmp.eq.s32.totalorder %s25, 1
      %p95 = por %p93, %p94
      %p97 = scmp.ne.s32.totalorder %s82, %s96
      %p98 = scmp.eq.s32.totalorder %s25, 0
      %p99 = por %p97, %p98
      %s101 = sadd.s32 %s100, 1
      %p104 = scmp.eq.s32.totalorder %s19, 1
      %p105 = scmp.ne.s32.totalorder %s100, %s102
      %p106 = scmp.eq.s32.totalorder %s19, 0
      %p107 = por %p105, %p106
      %p108 = scmp.ne.s32.totalorder %s100, %s102
      %p109 = scmp.eq.s32.totalorder %s24, 1
      %p110 = por %p108, %p109
      %p111 = scmp.ne.s32.totalorder %s102, %s103
      %p112 = scmp.eq.s32.totalorder %s24, 0
      %p113 = por %p111, %p112
      %p114 = scmp.ne.s32.totalorder %s102, %s103
      %p115 = scmp.eq.s32.totalorder %s25, 1
      %p116 = por %p114, %p115
      %p118 = scmp.ne.s32.totalorder %s103, %s117
      %p119 = scmp.eq.s32.totalorder %s25, 0
      %p120 = por %p118, %p119
      %s122 = sadd.s32 %s121, 1
      %p125 = scmp.eq.s32.totalorder %s19, 1
      %p126 = scmp.ne.s32.totalorder %s121, %s123
      %p127 = scmp.eq.s32.totalorder %s19, 0
      %p128 = por %p126, %p127
      %p129 = scmp.ne.s32.totalorder %s121, %s123
      %p130 = scmp.eq.s32.totalorder %s24, 1
      %p131 = por %p129, %p130
      %p132 = scmp.ne.s32.totalorder %s123, %s124
      %p133 = scmp.eq.s32.totalorder %s24, 0
      %p134 = por %p132, %p133
      %p135 = scmp.ne.s32.totalorder %s123, %s124
      %p136 = scmp.eq.s32.totalorder %s25, 1
      %p137 = por %p135, %p136
      %p139 = scmp.ne.s32.totalorder %s124, %s138
      %p140 = scmp.eq.s32.totalorder %s25, 0
      %p141 = por %p139, %p140
      %s143 = sadd.s32 %s142, 1
      %p146 = scmp.eq.s32.totalorder %s19, 1
      %p147 = scmp.ne.s32.totalorder %s142, %s144
      %p148 = scmp.eq.s32.totalorder %s19, 0
      %p149 = por %p147, %p148
      %p150 = scmp.ne.s32.totalorder %s142, %s144
      %p151 = scmp.eq.s32.totalorder %s24, 1
      %p152 = por %p150, %p151
      %p153 = scmp.ne.s32.totalorder %s144, %s145
      %p154 = scmp.eq.s32.totalorder %s24, 0
      %p155 = por %p153, %p154
      %p156 = scmp.ne.s32.totalorder %s144, %s145
      %p157 = scmp.eq.s32.totalorder %s25, 1
      %p158 = por %p156, %p157
      %p160 = scmp.ne.s32.totalorder %s145, %s159
      %p161 = scmp.eq.s32.totalorder %s25, 0
      %p162 = por %p160, %p161
      %s164 = sadd.s32 %s163, 1
      %p167 = scmp.eq.s32.totalorder %s19, 1
      %p168 = scmp.ne.s32.totalorder %s163, %s165
      %p169 = scmp.eq.s32.totalorder %s19, 0
      %p170 = por %p168, %p169
      %p171 = scmp.ne.s32.totalorder %s163, %s165
      %p172 = scmp.eq.s32.totalorder %s24, 1
      %p173 = por %p171, %p172
      %p174 = scmp.ne.s32.totalorder %s165, %s166
      %p175 = scmp.eq.s32.totalorder %s24, 0
      %p176 = por %p174, %p175
      %p177 = scmp.ne.s32.totalorder %s165, %s166
      %p178 = scmp.eq.s32.totalorder %s25, 1
      %p179 = por %p177, %p178
      %p181 = scmp.ne.s32.totalorder %s166, %s180
      %p182 = scmp.eq.s32.totalorder %s25, 0
      %p183 = por %p181, %p182
      %s185 = sadd.s32 %s184, 1
      %p188 = scmp.eq.s32.totalorder %s19, 1
      %p189 = scmp.ne.s32.totalorder %s184, %s186
      %p190 = scmp.eq.s32.totalorder %s19, 0
      %p191 = por %p189, %p190
      %p192 = scmp.ne.s32.totalorder %s184, %s186
      %p193 = scmp.eq.s32.totalorder %s24, 1
      %p194 = por %p192, %p193
      %p195 = scmp.ne.s32.totalorder %s186, %s187
      %p196 = scmp.eq.s32.totalorder %s24, 0
      %p197 = por %p195, %p196
      %p198 = scmp.ne.s32.totalorder %s186, %s187
      %p199 = scmp.eq.s32.totalorder %s25, 1
      %p200 = por %p198, %p199
      %p202 = scmp.ne.s32.totalorder %s187, %s201
      %p203 = scmp.eq.s32.totalorder %s25, 0
      %p204 = por %p202, %p203
      %s206 = sadd.s32 %s205, 1
      %p209 = scmp.eq.s32.totalorder %s19, 1
      %p210 = scmp.ne.s32.totalorder %s205, %s207
      %p211 = scmp.eq.s32.totalorder %s19, 0
      %p212 = por %p210, %p211
      %p213 = scmp.ne.s32.totalorder %s205, %s207
      %p214 = scmp.eq.s32.totalorder %s24, 1
      %p215 = por %p213, %p214
      %p216 = scmp.ne.s32.totalorder %s207, %s208
      %p217 = scmp.eq.s32.totalorder %s24, 0
      %p218 = por %p216, %p217
      %p219 = scmp.ne.s32.totalorder %s207, %s208
      %p220 = scmp.eq.s32.totalorder %s25, 1
      %p221 = por %p219, %p220
      %p223 = scmp.ne.s32.totalorder %s208, %s222
      %p224 = scmp.eq.s32.totalorder %s25, 0
      %p225 = por %p223, %p224
      %s226 = ssub.s32 %s19, %s26
      %p227 = scmp.eq.s32.totalorder %s226, 0
      %s229 = sadd.s32 %s228, 1
      %s230 = scalar_select %p227, %s228, %s229
      %p233 = pneg %p227
      %p234 = scmp.eq.s32.totalorder %s19, 1
      %p235 = por %p233, %p234
      %p236 = scmp.ne.s32.totalorder %s228, %s231
      %p237 = scmp.eq.s32.totalorder %s19, 0
      %p238 = por %p236, %p237
      %p239 = scmp.ne.s32.totalorder %s228, %s231
      %p240 = scmp.eq.s32.totalorder %s24, 1
      %p241 = por %p239, %p240
      %p242 = scmp.ne.s32.totalorder %s231, %s232
      %p243 = scmp.eq.s32.totalorder %s24, 0
      %p244 = por %p242, %p243
      %p245 = scmp.ne.s32.totalorder %s231, %s232
      %p246 = scmp.eq.s32.totalorder %s25, 1
      %p247 = por %p245, %p246
      %p249 = scmp.ne.s32.totalorder %s232, %s248
      %p250 = scmp.eq.s32.totalorder %s25, 0
      %p251 = por %p249, %p250
      %p252 = scmp.le.s32.totalorder 1, %s19
      %p253 = scmp.lt.s32.totalorder %s19, 3
      %p254 = pnand %p252, %p253
      %p255 = pneg %p254
      // Predicated region
      $region9: #{tpu_custom_call.1} parent=5 // pred_check
        _
      $region10: #{tpu_custom_call.1} parent=5 // pred_check_branch
        %257 = sbr.rel (%p254) target = $region12
      $region11: #{tpu_custom_call.1} parent=5 // pred_region
        %s258 = ssub.s32 %s19, 1
        // Predicated region
        $region13: #{tpu_custom_call.1} parent=11 // pred_check
          %p259 = pneg %p92
        $region14: #{tpu_custom_call.1} parent=11 // pred_check_branch
          %261 = sbr.rel (%p259) target = $region16
        $region15: #{tpu_custom_call.1} parent=11 // pred_region
          _
        $region16: #{tpu_custom_call.1} parent=11 // pred_fallthru
          _
        // Predicated region
        $region17: #{tpu_custom_call.1} parent=11 // pred_check
          %p262 = pneg %p113
        $region18: #{tpu_custom_call.1} parent=11 // pred_check_branch
          %264 = sbr.rel (%p262) target = $region20
        $region19: #{tpu_custom_call.1} parent=11 // pred_region
          _
        $region20: #{tpu_custom_call.1} parent=11 // pred_fallthru
          _
        // Predicated region
        $region21: #{tpu_custom_call.1} parent=11 // pred_check
          %p265 = pneg %p134
        $region22: #{tpu_custom_call.1} parent=11 // pred_check_branch
          %267 = sbr.rel (%p265) target = $region24
        $region23: #{tpu_custom_call.1} parent=11 // pred_region
          _
        $region24: #{tpu_custom_call.1} parent=11 // pred_fallthru
          _
        // Predicated region
        $region25: #{tpu_custom_call.1} parent=11 // pred_check
          %p268 = pneg %p155
        $region26: #{tpu_custom_call.1} parent=11 // pred_check_branch
          %270 = sbr.rel (%p268) target = $region28
        $region27: #{tpu_custom_call.1} parent=11 // pred_region
          _
        $region28: #{tpu_custom_call.1} parent=11 // pred_fallthru
          _
        // Predicated region
        $region29: #{tpu_custom_call.1} parent=11 // pred_check
          %p271 = pneg %p176
        $region30: #{tpu_custom_call.1} parent=11 // pred_check_branch
          %273 = sbr.rel (%p271) target = $region32
        $region31: #{tpu_custom_call.1} parent=11 // pred_region
          _
        $region32: #{tpu_custom_call.1} parent=11 // pred_fallthru
          _
        // Predicated region
        $region33: #{tpu_custom_call.1} parent=11 // pred_check
          %p274 = pneg %p197
        $region34: #{tpu_custom_call.1} parent=11 // pred_check_branch
          %276 = sbr.rel (%p274) target = $region36
        $region35: #{tpu_custom_call.1} parent=11 // pred_region
          _
        $region36: #{tpu_custom_call.1} parent=11 // pred_fallthru
          _
        // Predicated region
        $region37: #{tpu_custom_call.1} parent=11 // pred_check
          %p277 = pneg %p218
        $region38: #{tpu_custom_call.1} parent=11 // pred_check_branch
          %279 = sbr.rel (%p277) target = $region40
        $region39: #{tpu_custom_call.1} parent=11 // pred_region
          %s281 = ssub.s32 128, 128
          %282 = vsyncadd [#allocation5], %s281
          %s284 = sshll.u32 [#allocation4], 4
          %s285 = int_to_ptr.vmem [resolvable:$true] %s284
          %287 = dma.hbm_to_vmem [thread:$0]  %s8, 128, %s285, [#allocation5]
        $region40: #{tpu_custom_call.1} parent=11 // pred_fallthru
          _
      $region12: #{tpu_custom_call.1} parent=5 // pred_fallthru
        _
      %p288 = scmp.lt.s32.totalorder %s19, 2
      // Predicated region
      $region41: #{tpu_custom_call.1} parent=5 // pred_check
        %p289 = pneg %p288
      $region42: #{tpu_custom_call.1} parent=5 // pred_check_branch
        %291 = sbr.rel (%p289) target = $region44
      $region43: #{tpu_custom_call.1} parent=5 // pred_region
        // Predicated region
        $region45: #{tpu_custom_call.1} parent=43 // pred_check
          %p292 = pneg %p39
        $region46: #{tpu_custom_call.1} parent=43 // pred_check_branch
          %294 = sbr.rel (%p292) target = $region48
        $region47: #{tpu_custom_call.1} parent=43 // pred_region
          %s295 = sand.u32 %s29, 1
          %s296 = scalar_lea.sflag [#allocation3], %s295
          %s297 = sand.u32 %s29, 1
          %s298 = scalar_lea.vmem [#allocation2], %s297
          %s300 = ssub.s32 16, 16
          %301 = vsyncadd %s296, %s300
          %s302 = smul.addr %s19, 16
          %s303 = scalar_lea.hbm %s0, %s302
          %s305 = sshll.u32 %s298, 4
          %s306 = int_to_ptr.vmem [resolvable:$true] %s305
          %308 = dma.hbm_to_vmem [thread:$0]  %s303, 16, %s306, %s296
        $region48: #{tpu_custom_call.1} parent=43 // pred_fallthru
          _
        // Predicated region
        $region49: #{tpu_custom_call.1} parent=43 // pred_check
          %p309 = pneg %p65
        $region50: #{tpu_custom_call.1} parent=43 // pred_check_branch
          %311 = sbr.rel (%p309) target = $region52
        $region51: #{tpu_custom_call.1} parent=43 // pred_region
          %p312 = scmp.lt.s32.totalorder %s19, 1
          %s313 = scalar_select %p312, %s19, 1
          %s314 = smul.addr %s313, 4
          %s315 = smul.addr %s314, 4
          %s316 = scalar_lea.vmem %s1, %s315
        $region52: #{tpu_custom_call.1} parent=43 // pred_fallthru
          _
      $region44: #{tpu_custom_call.1} parent=5 // pred_fallthru
        _
      %p317 = scmp.le.s32.totalorder 1, %s19
      %p318 = scmp.lt.s32.totalorder %s19, 3
      %p319 = pnand %p317, %p318
      %p320 = pneg %p319
      // Predicated region
      $region53: #{tpu_custom_call.1} parent=5 // pred_check
        _
      $region54: #{tpu_custom_call.1} parent=5 // pred_check_branch
        %322 = sbr.rel (%p319) target = $region56
      $region55: #{tpu_custom_call.1} parent=5 // pred_region
        %s323 = ssub.s32 %s19, 1
        %s324 = sand.u32 %s32, 1
        %s325 = scalar_lea.sflag [#allocation3], %s324
        %s326 = sand.u32 %s32, 1
        %s327 = scalar_lea.vmem [#allocation2], %s326
        // Predicated region
        $region57: #{tpu_custom_call.1} parent=55 // pred_check
          %p328 = pneg %p45
        $region58: #{tpu_custom_call.1} parent=55 // pred_check_branch
          %330 = sbr.rel (%p328) target = $region60
        $region59: #{tpu_custom_call.1} parent=55 // pred_region
          %331 = dma.done %s325, 16
        $region60: #{tpu_custom_call.1} parent=55 // pred_fallthru
          _
        // Predicated region
        $region61: #{tpu_custom_call.1} parent=55 // pred_check
          %p332 = pneg %p218
        $region62: #{tpu_custom_call.1} parent=55 // pred_check_branch
          %334 = sbr.rel (%p332) target = $region64
        $region63: #{tpu_custom_call.1} parent=55 // pred_region
          %335 = dma.done [#allocation5], 128
        $region64: #{tpu_custom_call.1} parent=55 // pred_fallthru
          _
        %s336 = sand.u32 %s32, 1
        %s337 = scalar_lea.sflag [#allocation3], %s336
        %s338 = sand.u32 %s32, 1
        %s339 = scalar_lea.vmem [#allocation2], %s338
        %p340 = pneg %p45
        %p341 = pneg %p42
        %p342 = scmp.lt.s32.totalorder %s24, 1
        %s343 = scalar_select %p342, %s24, 1
        %s344 = smul.addr %s343, 4
        %s345 = smul.addr %s344, 4
        %s346 = scalar_lea.vmem %s1, %s345
        %p347 = pneg %p71
        %p348 = pneg %p68
        %p349 = pneg %p92
        %p350 = pneg %p89
        %p351 = pneg %p113
        %p352 = pneg %p110
        %p353 = pneg %p134
        %p354 = pneg %p131
        %p355 = pneg %p155
        %p356 = pneg %p152
        %p357 = pneg %p176
        %p358 = pneg %p173
        %p359 = pneg %p197
        %p360 = pneg %p194
        %p361 = pneg %p218
        %p362 = pneg %p215
        %p363 = pneg %p244
        %p364 = pneg %p241
        %p365 = scmp.lt.s32.totalorder %s24, 1
        %s366 = scalar_select %p365, %s24, 1
        %s367 = smul.addr %s366, 4
        %s368 = smul.addr %s367, 8
        %s369 = scalar_lea.vmem %s9, %s368
        %p370 = scmp.lt.s32.totalorder %s24, 1
        %s371 = scalar_select %p370, %s24, 1
        %s372 = smul.addr %s371, 4
        %s373 = smul.addr %s372, 4
        %s374 = scalar_lea.vmem %s1, %s373
        %p375 = scmp.lt.s32.totalorder %s24, 1
        %s376 = scalar_select %p375, %s24, 1
        %s377 = smul.addr %s376, 4
        %s378 = smul.addr %s377, 8
        %s379 = scalar_lea.vmem %s9, %s378
        %v381 = vld [vmem:[%s327] sm:$0x1]
        %v382 = vld [vmem:[%s374] sm:$0xf]
        %v383 = vld [vmem:[%s374 + $0x4] sm:$0xf]
        %v384 = vld [vmem:[%s374 + $0x8] sm:$0xf]
        %v385 = vld [vmem:[%s374 + $0xc] sm:$0xf]
        %v386 = vld [vmem:[%s2] sm:$0xff]
        %v387 = vld [vmem:[%s2 + $0x8] sm:$0xff]
        %v388 = vld [vmem:[%s2 + $0x10] sm:$0xff]
        %v389 = vld [vmem:[%s2 + $0x18] sm:$0xff]
        %vm390 = vcmask 261120
        %v392 = vsel %vm390, %v381, 0
        %394 = vmatprep.subr.mxu0 0.0
        %395 = vmatpush1.msra.mxu0 %v386
        %396 = vmatprep.subr.mxu0 0.0
        %397 = vmatpush1.msra.mxu0 %v387
        %398 = vmatprep.subr.mxu0 0.0
        %399 = vmatpush1.msra.mxu0 %v388
        %400 = vmatprep.subr.mxu0 0.0
        %401 = vmatpush1.msra.mxu0 %v389
        %402 = vmatprep.subr.mxu0 0.0
        %403 = vmatpush1.msra.mxu0 0.0
        %404 = vmatprep.subr.mxu0 0.0
        %405 = vmatpush1.msra.mxu0 0.0
        %406 = vmatprep.subr.mxu0 0.0
        %407 = vmatpush1.msra.mxu0 0.0
        %408 = vmatprep.subr.mxu0 0.0
        %409 = vmatpush1.msra.mxu0 0.0
        %410 = vmatprep.subr.mxu0 0.0
        %411 = vmatpush1.msra.mxu0 0.0
        %412 = vmatprep.subr.mxu0 0.0
        %413 = vmatpush1.msra.mxu0 0.0
        %414 = vmatprep.subr.mxu0 0.0
        %415 = vmatpush1.msra.mxu0 0.0
        %416 = vmatprep.subr.mxu0 0.0
        %417 = vmatpush1.msra.mxu0 0.0
        %418 = vmatprep.subr.mxu0 0.0
        %419 = vmatpush1.msra.mxu0 0.0
        %420 = vmatprep.subr.mxu0 0.0
        %421 = vmatpush1.msra.mxu0 0.0
        %422 = vmatprep.subr.mxu0 0.0
        %423 = vmatpush1.msra.mxu0 0.0
        %424 = vmatprep.subr.mxu0 0.0
        %425 = vmatpush1.msra.mxu0 0.0
        %426 = vmatprep.subr.mxu0 0.0
        %427 = vmatpush1.msra.mxu0 0.0
        %428 = vmatprep.subr.mxu0 0.0
        %429 = vmatpush1.msra.mxu0 0.0
        %430 = vmatprep.subr.mxu0 0.0
        %431 = vmatpush1.msra.mxu0 0.0
        %432 = vmatprep.subr.mxu0 0.0
        %433 = vmatpush1.msra.mxu0 0.0
        %434 = vmatprep.subr.mxu0 0.0
        %435 = vmatpush1.msra.mxu0 0.0
        %436 = vmatprep.subr.mxu0 0.0
        %437 = vmatpush1.msra.mxu0 0.0
        %438 = vmatprep.subr.mxu0 0.0
        %439 = vmatpush1.msra.mxu0 0.0
        %440 = vmatprep.subr.mxu0 0.0
        %441 = vmatpush1.msra.mxu0 0.0
        %442 = vmatprep.subr.mxu0 0.0
        %443 = vmatpush1.msra.mxu0 0.0
        %444 = vmatprep.subr.mxu0 0.0
        %445 = vmatpush1.msra.mxu0 0.0
        %446 = vmatprep.subr.mxu0 0.0
        %447 = vmatpush1.msra.mxu0 0.0
        %448 = vmatprep.subr.mxu0 0.0
        %449 = vmatpush1.msra.mxu0 0.0
        %450 = vmatprep.subr.mxu0 0.0
        %451 = vmatpush1.msra.mxu0 0.0
        %452 = vmatprep.subr.mxu0 0.0
        %453 = vmatpush1.msra.mxu0 0.0
        %454 = vmatprep.subr.mxu0 0.0
        %455 = vmatpush1.msra.mxu0 0.0
        %456 = vmatprep.subr.mxu0 0.0
        %457 = vmatpush1.msra.mxu0 0.0
        %458 = vmatprep.mubr.f32.mxu0 0.0
        %459 = vmatmul.mubr.f32.gmra.mrb[0].mxu0 %v392
        %v460 = vpop.f32.mrb[0].mxu0
        %v461 = vadd.f32 0.0, %v460
        %v462 = vpop.f32.mrb[0].mxu0
        %463 = vdwg.mxu0
        %v464 = vld [vmem:[#allocation4] sm:$0xff]
        %v465 = vmul.f32 %v461, 0.5
        %v466 = vlaneseq
        %v467 = vshrl.u32 %v466, 7
        %v468 = vsub.s32 0, %v467
        %v469 = vrot.slane %v465, %v468
        %v470 = vmul.f32 %v464, %v469
        %v471 = vld [vmem:[%s3] sm:$0xff]
        %v472 = vld [vmem:[%s3 + $0x8] sm:$0xff]
        %v473 = vld [vmem:[%s3 + $0x10] sm:$0xff]
        %v474 = vld [vmem:[%s3 + $0x18] sm:$0xff]
        %v476 = vsel %vm390, %v470, 0
        %478 = vmatprep.subr.mxu0 0.0
        %479 = vmatpush1.msra.mxu0 %v471
        %480 = vmatprep.subr.mxu0 0.0
        %481 = vmatpush1.msra.mxu0 %v472
        %482 = vmatprep.subr.mxu0 0.0
        %483 = vmatpush1.msra.mxu0 %v473
        %484 = vmatprep.subr.mxu0 0.0
        %485 = vmatpush1.msra.mxu0 %v474
        %486 = vmatprep.subr.mxu0 0.0
        %487 = vmatpush1.msra.mxu0 0.0
        %488 = vmatprep.subr.mxu0 0.0
        %489 = vmatpush1.msra.mxu0 0.0
        %490 = vmatprep.subr.mxu0 0.0
        %491 = vmatpush1.msra.mxu0 0.0
        %492 = vmatprep.subr.mxu0 0.0
        %493 = vmatpush1.msra.mxu0 0.0
        %494 = vmatprep.subr.mxu0 0.0
        %495 = vmatpush1.msra.mxu0 0.0
        %496 = vmatprep.subr.mxu0 0.0
        %497 = vmatpush1.msra.mxu0 0.0
        %498 = vmatprep.subr.mxu0 0.0
        %499 = vmatpush1.msra.mxu0 0.0
        %500 = vmatprep.subr.mxu0 0.0
        %501 = vmatpush1.msra.mxu0 0.0
        %502 = vmatprep.subr.mxu0 0.0
        %503 = vmatpush1.msra.mxu0 0.0
        %504 = vmatprep.subr.mxu0 0.0
        %505 = vmatpush1.msra.mxu0 0.0
        %506 = vmatprep.subr.mxu0 0.0
        %507 = vmatpush1.msra.mxu0 0.0
        %508 = vmatprep.subr.mxu0 0.0
        %509 = vmatpush1.msra.mxu0 0.0
        %510 = vmatprep.subr.mxu0 0.0
        %511 = vmatpush1.msra.mxu0 0.0
        %512 = vmatprep.subr.mxu0 0.0
        %513 = vmatpush1.msra.mxu0 0.0
        %514 = vmatprep.subr.mxu0 0.0
        %515 = vmatpush1.msra.mxu0 0.0
        %516 = vmatprep.subr.mxu0 0.0
        %517 = vmatpush1.msra.mxu0 0.0
        %518 = vmatprep.subr.mxu0 0.0
        %519 = vmatpush1.msra.mxu0 0.0
        %520 = vmatprep.subr.mxu0 0.0
        %521 = vmatpush1.msra.mxu0 0.0
        %522 = vmatprep.subr.mxu0 0.0
        %523 = vmatpush1.msra.mxu0 0.0
        %524 = vmatprep.subr.mxu0 0.0
        %525 = vmatpush1.msra.mxu0 0.0
        %526 = vmatprep.subr.mxu0 0.0
        %527 = vmatpush1.msra.mxu0 0.0
        %528 = vmatprep.subr.mxu0 0.0
        %529 = vmatpush1.msra.mxu0 0.0
        %530 = vmatprep.subr.mxu0 0.0
        %531 = vmatpush1.msra.mxu0 0.0
        %532 = vmatprep.subr.mxu0 0.0
        %533 = vmatpush1.msra.mxu0 0.0
        %534 = vmatprep.subr.mxu0 0.0
        %535 = vmatpush1.msra.mxu0 0.0
        %536 = vmatprep.subr.mxu0 0.0
        %537 = vmatpush1.msra.mxu0 0.0
        %538 = vmatprep.subr.mxu0 0.0
        %539 = vmatpush1.msra.mxu0 0.0
        %540 = vmatprep.subr.mxu0 0.0
        %541 = vmatpush1.msra.mxu0 0.0
        %542 = vmatprep.mubr.f32.mxu0 0.0
        %543 = vmatmul.mubr.f32.gmra.mrb[0].mxu0 %v476
        %v544 = vpop.f32.mrb[0].mxu0
        %v545 = vadd.f32 0.0, %v544
        %v546 = vpop.f32.mrb[0].mxu0
        %547 = vdwg.mxu0
        %v548 = vpack.c.bf16 %v545, %v545
        %v553 = vunpack.c.l.b16 %v382
        %v554 = vunpack.c.l.b16 %v383
        %v555 = vunpack.c.l.b16 %v384
        %v556 = vunpack.c.l.b16 %v385
        %v557 = vpack.c.b16 %v554, %v553
        %v558 = vpack.c.b16 %v556, %v555
        %v562 = vsel %vm390, %v548, 0
        %564 = vmatprep.subr.bf16.mxu0 0
        %565 = vmatpush1.bf16.msra.mxu0 %v557
        %566 = vmatprep.subr.bf16.mxu0 0
        %567 = vmatpush1.bf16.msra.mxu0 %v558
        %568 = vmatprep.subr.bf16.mxu0 0
        %569 = vmatpush1.bf16.msra.mxu0 0
        %570 = vmatprep.subr.bf16.mxu0 0
        %571 = vmatpush1.bf16.msra.mxu0 0
        %572 = vmatprep.subr.bf16.mxu0 0
        %573 = vmatpush1.bf16.msra.mxu0 0
        %574 = vmatprep.subr.bf16.mxu0 0
        %575 = vmatpush1.bf16.msra.mxu0 0
        %576 = vmatprep.subr.bf16.mxu0 0
        %577 = vmatpush1.bf16.msra.mxu0 0
        %578 = vmatprep.subr.bf16.mxu0 0
        %579 = vmatpush1.bf16.msra.mxu0 0
        %580 = vmatprep.subr.bf16.mxu0 0
        %581 = vmatpush1.bf16.msra.mxu0 0
        %582 = vmatprep.subr.bf16.mxu0 0
        %583 = vmatpush1.bf16.msra.mxu0 0
        %584 = vmatprep.subr.bf16.mxu0 0
        %585 = vmatpush1.bf16.msra.mxu0 0
        %586 = vmatprep.subr.bf16.mxu0 0
        %587 = vmatpush1.bf16.msra.mxu0 0
        %588 = vmatprep.subr.bf16.mxu0 0
        %589 = vmatpush1.bf16.msra.mxu0 0
        %590 = vmatprep.subr.bf16.mxu0 0
        %591 = vmatpush1.bf16.msra.mxu0 0
        %592 = vmatprep.subr.bf16.mxu0 0
        %593 = vmatpush1.bf16.msra.mxu0 0
        %594 = vmatprep.subr.bf16.mxu0 0
        %595 = vmatpush1.bf16.msra.mxu0 0
        %596 = vmatprep.mubr.bf16.mxu0 0
        %597 = vmatmul.mubr.bf16.gmra.mrb[0].mxu0 %v562
        %v598 = vpop.f32.mrb[0].mxu0
        %v599 = vadd.f32 0.0, %v598
        %v600 = vpop.f32.mrb[0].mxu0
        %v601 = vpop.f32.mrb[0].mxu0
        %v602 = vpop.f32.mrb[0].mxu0
        %603 = vdwg.mxu0
        %vm604 = vcmask 64512
        %v605 = vsel %vm604, %v599, -inf
        %606 = vmax.xlane.f32.xlu0 %v605
        %v607 = vpop.xlane.xlu0 %606
        %v608 = vsub.f32 %v599, %v607
        %v609 = vmul.f32 %v608, 1.442695
        %v610 = vpow.pop %v609
        %v611 = vsel %vm604, %v610, 0.0
        %612 = vadd.xlane.f32.xlu0 %v611
        %v613 = vpop.xlane.xlu0 %612
        %v614 = vrcp.pop %v613
        %v615 = vmul.f32 %v610, %v614
        %v616 = vpack.c.bf16 %v615, %v615
        %v618 = vsel %vm604, %v557, 0
        %v621 = vsel %vm604, %v558, 0
        %v624 = vsel %vm604, %v616, 0
        %626 = vmatprep.subr.bf16.mxu0 0
        %627 = vmatpush1.bf16.xpose.msra.mxu0 %v624
        %628 = vmatprep.subr.bf16.mxu0 0
        %629 = vmatpush1.bf16.xpose.msra.mxu0 0
        %630 = vmatprep.subr.bf16.mxu0 0
        %631 = vmatpush1.bf16.xpose.msra.mxu0 0
        %632 = vmatprep.subr.bf16.mxu0 0
        %633 = vmatpush1.bf16.xpose.msra.mxu0 0
        %634 = vmatprep.subr.bf16.mxu0 0
        %635 = vmatpush1.bf16.xpose.msra.mxu0 0
        %636 = vmatprep.subr.bf16.mxu0 0
        %637 = vmatpush1.bf16.xpose.msra.mxu0 0
        %638 = vmatprep.subr.bf16.mxu0 0
        %639 = vmatpush1.bf16.xpose.msra.mxu0 0
        %640 = vmatprep.subr.bf16.mxu0 0
        %641 = vmatpush1.bf16.xpose.msra.mxu0 0
        %642 = vmatprep.subr.bf16.mxu0 0
        %643 = vmatpush1.bf16.xpose.msra.mxu0 0
        %644 = vmatprep.subr.bf16.mxu0 0
        %645 = vmatpush1.bf16.xpose.msra.mxu0 0
        %646 = vmatprep.subr.bf16.mxu0 0
        %647 = vmatpush1.bf16.xpose.msra.mxu0 0
        %648 = vmatprep.subr.bf16.mxu0 0
        %649 = vmatpush1.bf16.xpose.msra.mxu0 0
        %650 = vmatprep.subr.bf16.mxu0 0
        %651 = vmatpush1.bf16.xpose.msra.mxu0 0
        %652 = vmatprep.subr.bf16.mxu0 0
        %653 = vmatpush1.bf16.xpose.msra.mxu0 0
        %654 = vmatprep.subr.bf16.mxu0 0
        %655 = vmatpush1.bf16.xpose.msra.mxu0 0
        %656 = vmatprep.subr.bf16.mxu0 0
        %657 = vmatpush1.bf16.xpose.msra.mxu0 0
        %658 = vmatprep.mubr.bf16.mxu0 0
        %659 = vmatmul.mubr.bf16.gmra.mrb[0].mxu0 %v618
        %v660 = vpop.f32.mrb[0].mxu0
        %v661 = vadd.f32 0.0, %v660
        %v662 = vpop.f32.mrb[0].mxu0
        %v663 = vpop.f32.mrb[0].mxu0
        %v664 = vadd.f32 0.0, %v663
        %v665 = vpop.f32.mrb[0].mxu0
        %666 = vmatprep.mubr.bf16.mxu0 0
        %667 = vmatmul.mubr.bf16.gmra.mrb[0].mxu0 %v621
        %v668 = vpop.f32.mrb[0].mxu0
        %v669 = vadd.f32 0.0, %v668
        %v670 = vpop.f32.mrb[0].mxu0
        %v671 = vpop.f32.mrb[0].mxu0
        %v672 = vadd.f32 0.0, %v671
        %v673 = vpop.f32.mrb[0].mxu0
        %674 = vdwg.mxu0
        %v675 = vld [vmem:[%s4] sm:$0xff]
        %v676 = vld [vmem:[%s4 + $0x8] sm:$0xff]
        %v677 = vld [vmem:[%s4 + $0x10] sm:$0xff]
        %v678 = vld [vmem:[%s4 + $0x18] sm:$0xff]
        %v680 = vsel %vm390, %v675, 0
        %v683 = vsel %vm390, %v676, 0
        %v686 = vsel %vm390, %v677, 0
        %v689 = vsel %vm390, %v678, 0
        %691 = vmatprep.subr.mxu0 0.0
        %692 = vmatpush1.msra.mxu0 %v661
        %693 = vmatprep.subr.mxu0 0.0
        %694 = vmatpush1.msra.mxu0 %v664
        %695 = vmatprep.subr.mxu0 0.0
        %696 = vmatpush1.msra.mxu0 %v669
        %697 = vmatprep.subr.mxu0 0.0
        %698 = vmatpush1.msra.mxu0 %v672
        %699 = vmatprep.subr.mxu0 0.0
        %700 = vmatpush1.msra.mxu0 0.0
        %701 = vmatprep.subr.mxu0 0.0
        %702 = vmatpush1.msra.mxu0 0.0
        %703 = vmatprep.subr.mxu0 0.0
        %704 = vmatpush1.msra.mxu0 0.0
        %705 = vmatprep.subr.mxu0 0.0
        %706 = vmatpush1.msra.mxu0 0.0
        %707 = vmatprep.subr.mxu0 0.0
        %708 = vmatpush1.msra.mxu0 0.0
        %709 = vmatprep.subr.mxu0 0.0
        %710 = vmatpush1.msra.mxu0 0.0
        %711 = vmatprep.subr.mxu0 0.0
        %712 = vmatpush1.msra.mxu0 0.0
        %713 = vmatprep.subr.mxu0 0.0
        %714 = vmatpush1.msra.mxu0 0.0
        %715 = vmatprep.subr.mxu0 0.0
        %716 = vmatpush1.msra.mxu0 0.0
        %717 = vmatprep.subr.mxu0 0.0
        %718 = vmatpush1.msra.mxu0 0.0
        %719 = vmatprep.subr.mxu0 0.0
        %720 = vmatpush1.msra.mxu0 0.0
        %721 = vmatprep.subr.mxu0 0.0
        %722 = vmatpush1.msra.mxu0 0.0
        %723 = vmatprep.subr.mxu0 0.0
        %724 = vmatpush1.msra.mxu0 0.0
        %725 = vmatprep.subr.mxu0 0.0
        %726 = vmatpush1.msra.mxu0 0.0
        %727 = vmatprep.subr.mxu0 0.0
        %728 = vmatpush1.msra.mxu0 0.0
        %729 = vmatprep.subr.mxu0 0.0
        %730 = vmatpush1.msra.mxu0 0.0
        %731 = vmatprep.subr.mxu0 0.0
        %732 = vmatpush1.msra.mxu0 0.0
        %733 = vmatprep.subr.mxu0 0.0
        %734 = vmatpush1.msra.mxu0 0.0
        %735 = vmatprep.subr.mxu0 0.0
        %736 = vmatpush1.msra.mxu0 0.0
        %737 = vmatprep.subr.mxu0 0.0
        %738 = vmatpush1.msra.mxu0 0.0
        %739 = vmatprep.subr.mxu0 0.0
        %740 = vmatpush1.msra.mxu0 0.0
        %741 = vmatprep.subr.mxu0 0.0
        %742 = vmatpush1.msra.mxu0 0.0
        %743 = vmatprep.subr.mxu0 0.0
        %744 = vmatpush1.msra.mxu0 0.0
        %745 = vmatprep.subr.mxu0 0.0
        %746 = vmatpush1.msra.mxu0 0.0
        %747 = vmatprep.subr.mxu0 0.0
        %748 = vmatpush1.msra.mxu0 0.0
        %749 = vmatprep.subr.mxu0 0.0
        %750 = vmatpush1.msra.mxu0 0.0
        %751 = vmatprep.subr.mxu0 0.0
        %752 = vmatpush1.msra.mxu0 0.0
        %753 = vmatprep.subr.mxu0 0.0
        %754 = vmatpush1.msra.mxu0 0.0
        %755 = vmatprep.mubr.f32.mxu0 0.0
        %756 = vmatmul.mubr.f32.gmra.mrb[0].mxu0 %v680
        %v757 = vpop.f32.mrb[0].mxu0
        %v758 = vadd.f32 0.0, %v757
        %v759 = vpop.f32.mrb[0].mxu0
        %760 = vmatprep.mubr.f32.mxu0 0.0
        %761 = vmatmul.mubr.f32.gmra.mrb[0].mxu0 %v683
        %v762 = vpop.f32.mrb[0].mxu0
        %v763 = vadd.f32 0.0, %v762
        %v764 = vpop.f32.mrb[0].mxu0
        %765 = vmatprep.mubr.f32.mxu0 0.0
        %766 = vmatmul.mubr.f32.gmra.mrb[0].mxu0 %v686
        %v767 = vpop.f32.mrb[0].mxu0
        %v768 = vadd.f32 0.0, %v767
        %v769 = vpop.f32.mrb[0].mxu0
        %770 = vmatprep.mubr.f32.mxu0 0.0
        %771 = vmatmul.mubr.f32.gmra.mrb[0].mxu0 %v689
        %v772 = vpop.f32.mrb[0].mxu0
        %v773 = vadd.f32 0.0, %v772
        %v774 = vpop.f32.mrb[0].mxu0
        %775 = vdwg.mxu0
        %v776 = vld [vmem:[%s7] sm:$0xff]
        %v777 = vld [vmem:[%s7 + $0x8] sm:$0xff]
        %v778 = vld [vmem:[%s7 + $0x10] sm:$0xff]
        %v779 = vld [vmem:[%s7 + $0x18] sm:$0xff]
        %v780 = vmul.f32 %v758, %v776
        %v781 = vmul.f32 %v763, %v777
        %v782 = vmul.f32 %v768, %v778
        %v783 = vmul.f32 %v773, %v779
        %v784 = vsel %vm604, %v780, 0.0
        %785 = vadd.xlane.f32.xlu0 %v784
        %v786 = vpop.xlane.xlu0 %785
        %v787 = vsel %vm604, %v781, 0.0
        %788 = vadd.xlane.f32.xlu0 %v787
        %v789 = vpop.xlane.xlu0 %788
        %v790 = vsel %vm604, %v782, 0.0
        %791 = vadd.xlane.f32.xlu0 %v790
        %v792 = vpop.xlane.xlu0 %791
        %v793 = vsel %vm604, %v783, 0.0
        %794 = vadd.xlane.f32.xlu0 %v793
        %v795 = vpop.xlane.xlu0 %794
        %v796 = vld [vmem:[%s5] sm:$0xff]
        %v797 = vld [vmem:[%s5 + $0x8] sm:$0xff]
        %v798 = vld [vmem:[%s5 + $0x10] sm:$0xff]
        %v799 = vld [vmem:[%s5 + $0x18] sm:$0xff]
        %v800 = vld [vmem:[%s6] sm:$0xff]
        %v801 = vld [vmem:[%s6 + $0x8] sm:$0xff]
        %v802 = vld [vmem:[%s6 + $0x10] sm:$0xff]
        %v803 = vld [vmem:[%s6 + $0x18] sm:$0xff]
        %v805 = vsel %vm390, %v796, 0
        %v808 = vsel %vm390, %v797, 0
        %v811 = vsel %vm390, %v798, 0
        %v814 = vsel %vm390, %v799, 0
        %816 = vmatprep.subr.mxu0 0.0
        %817 = vmatpush1.msra.mxu0 %v786
        %818 = vmatprep.subr.mxu0 0.0
        %819 = vmatpush1.msra.mxu0 %v789
        %820 = vmatprep.subr.mxu0 0.0
        %821 = vmatpush1.msra.mxu0 %v792
        %822 = vmatprep.subr.mxu0 0.0
        %823 = vmatpush1.msra.mxu0 %v795
        %824 = vmatprep.subr.mxu0 0.0
        %825 = vmatpush1.msra.mxu0 0.0
        %826 = vmatprep.subr.mxu0 0.0
        %827 = vmatpush1.msra.mxu0 0.0
        %828 = vmatprep.subr.mxu0 0.0
        %829 = vmatpush1.msra.mxu0 0.0
        %830 = vmatprep.subr.mxu0 0.0
        %831 = vmatpush1.msra.mxu0 0.0
        %832 = vmatprep.subr.mxu0 0.0
        %833 = vmatpush1.msra.mxu0 0.0
        %834 = vmatprep.subr.mxu0 0.0
        %835 = vmatpush1.msra.mxu0 0.0
        %836 = vmatprep.subr.mxu0 0.0
        %837 = vmatpush1.msra.mxu0 0.0
        %838 = vmatprep.subr.mxu0 0.0
        %839 = vmatpush1.msra.mxu0 0.0
        %840 = vmatprep.subr.mxu0 0.0
        %841 = vmatpush1.msra.mxu0 0.0
        %842 = vmatprep.subr.mxu0 0.0
        %843 = vmatpush1.msra.mxu0 0.0
        %844 = vmatprep.subr.mxu0 0.0
        %845 = vmatpush1.msra.mxu0 0.0
        %846 = vmatprep.subr.mxu0 0.0
        %847 = vmatpush1.msra.mxu0 0.0
        %848 = vmatprep.subr.mxu0 0.0
        %849 = vmatpush1.msra.mxu0 0.0
        %850 = vmatprep.subr.mxu0 0.0
        %851 = vmatpush1.msra.mxu0 0.0
        %852 = vmatprep.subr.mxu0 0.0
        %853 = vmatpush1.msra.mxu0 0.0
        %854 = vmatprep.subr.mxu0 0.0
        %855 = vmatpush1.msra.mxu0 0.0
        %856 = vmatprep.subr.mxu0 0.0
        %857 = vmatpush1.msra.mxu0 0.0
        %858 = vmatprep.subr.mxu0 0.0
        %859 = vmatpush1.msra.mxu0 0.0
        %860 = vmatprep.subr.mxu0 0.0
        %861 = vmatpush1.msra.mxu0 0.0
        %862 = vmatprep.subr.mxu0 0.0
        %863 = vmatpush1.msra.mxu0 0.0
        %864 = vmatprep.subr.mxu0 0.0
        %865 = vmatpush1.msra.mxu0 0.0
        %866 = vmatprep.subr.mxu0 0.0
        %867 = vmatpush1.msra.mxu0 0.0
        %868 = vmatprep.subr.mxu0 0.0
        %869 = vmatpush1.msra.mxu0 0.0
        %870 = vmatprep.subr.mxu0 0.0
        %871 = vmatpush1.msra.mxu0 0.0
        %872 = vmatprep.subr.mxu0 0.0
        %873 = vmatpush1.msra.mxu0 0.0
        %874 = vmatprep.subr.mxu0 0.0
        %875 = vmatpush1.msra.mxu0 0.0
        %876 = vmatprep.subr.mxu0 0.0
        %877 = vmatpush1.msra.mxu0 0.0
        %878 = vmatprep.subr.mxu0 0.0
        %879 = vmatpush1.msra.mxu0 0.0
        %880 = vmatprep.mubr.f32.mxu0 0.0
        %881 = vmatmul.mubr.f32.gmra.mrb[0].mxu0 %v805
        %v882 = vpop.f32.mrb[0].mxu0
        %v883 = vadd.f32 %v800, %v882
        %v884 = vpop.f32.mrb[0].mxu0
        %885 = vmatprep.mubr.f32.mxu0 0.0
        %886 = vmatmul.mubr.f32.gmra.mrb[0].mxu0 %v808
        %v887 = vpop.f32.mrb[0].mxu0
        %v888 = vadd.f32 %v801, %v887
        %v889 = vpop.f32.mrb[0].mxu0
        %890 = vmatprep.mubr.f32.mxu0 0.0
        %891 = vmatmul.mubr.f32.gmra.mrb[0].mxu0 %v811
        %v892 = vpop.f32.mrb[0].mxu0
        %v893 = vadd.f32 %v802, %v892
        %v894 = vpop.f32.mrb[0].mxu0
        %895 = vmatprep.mubr.f32.mxu0 0.0
        %896 = vmatmul.mubr.f32.gmra.mrb[0].mxu0 %v814
        %v897 = vpop.f32.mrb[0].mxu0
        %v898 = vadd.f32 %v803, %v897
        %v899 = vpop.f32.mrb[0].mxu0
        %900 = vdwg.mxu0
        %vm901 = vcmask 7168
        %902 = vst.msk [vmem:[%s379] sm:$0xff] %vm901, %v883
        %903 = vst.msk [vmem:[%s379 + $0x8] sm:$0xff] %vm901, %v888
        %904 = vst.msk [vmem:[%s379 + $0x10] sm:$0xff] %vm901, %v893
        %905 = vst.msk [vmem:[%s379 + $0x18] sm:$0xff] %vm901, %v898
        %p906 = scmp.lt.s32.totalorder %s24, 1
        %s907 = scalar_select %p906, %s24, 1
        %s908 = smul.addr %s907, 4
        %s909 = smul.addr %s908, 8
        %s910 = scalar_lea.vmem %s9, %s909
        // Predicated region
        $region65: #{tpu_custom_call.1} parent=55 // pred_check
          %p911 = pneg %p241
        $region66: #{tpu_custom_call.1} parent=55 // pred_check_branch
          %913 = sbr.rel (%p911) target = $region68
        $region67: #{tpu_custom_call.1} parent=55 // pred_region
          _
        $region68: #{tpu_custom_call.1} parent=55 // pred_fallthru
          _
      $region56: #{tpu_custom_call.1} parent=5 // pred_fallthru
        _
      %p914 = scmp.le.s32.totalorder 2, %s19
      // Predicated region
      $region69: #{tpu_custom_call.1} parent=5 // pred_check
        %p915 = pneg %p914
      $region70: #{tpu_custom_call.1} parent=5 // pred_check_branch
        %917 = sbr.rel (%p915) target = $region72
      $region71: #{tpu_custom_call.1} parent=5 // pred_region
        %s918 = ssub.s32 %s19, 2
        // Predicated region
        $region73: #{tpu_custom_call.1} parent=71 // pred_check
          %p919 = pneg %p247
        $region74: #{tpu_custom_call.1} parent=71 // pred_check_branch
          %921 = sbr.rel (%p919) target = $region76
        $region75: #{tpu_custom_call.1} parent=71 // pred_region
          %p922 = scmp.lt.s32.totalorder %s25, 1
          %s923 = scalar_select %p922, %s25, 1
          %s924 = smul.addr %s923, 4
          %s925 = smul.addr %s924, 8
          %s926 = scalar_lea.vmem %s9, %s925
        $region76: #{tpu_custom_call.1} parent=71 // pred_fallthru
          _
      $region72: #{tpu_custom_call.1} parent=5 // pred_fallthru
        _
    $region6: #{tpu_custom_call.1} parent=1 // loop_footer
      %s23 = sadd.s32 1, %s19
    $region7: #{tpu_custom_call.1} parent=1 // loop_footer_branch
      %18 = sbr.rel target = $region3
    $region8: #{tpu_custom_call.1} parent=1 // loop_exit
      _
    %927 = vsyncpa [#allocation3], 1
    %s928 = scalar_lea.sflag [#allocation3], 1
    %929 = vsyncpa %s928, 1
    %930 = vsyncpa [#allocation5], 1

</llo_original>
